<compile_context>
chip_gen: v5e
topology: v5e:2x2
jax: 0.10.0
libtpu: 0.0.40
codegen_flags: <defaults>
</compile_context>

<pallas_src>
import functools

import jax
import jax.numpy as jnp
from jax.experimental import pallas as pl
from jax.experimental.pallas import tpu as pltpu

_LANE = 128                      # TPU vreg lane width -> channel / K padding target
_ACT_DTYPE = jnp.bfloat16        # inter-layer activation / MXU input dtype
_TM_MAX = 512                    # max M-tile (rows) for the conv-as-matmul kernel
_NEG_LARGE = -3.0e38             # finite in bf16 and f32; maxpool pad value
_VMEM_LIMIT = 48 * 1024 * 1024   # above 32MiB scoped default, below v7x 64MiB physical


def _round_up(x, m):
    return ((x + m - 1) // m) * m


def _pick_tm(m_rows, tm_max=_TM_MAX):
    """Pick an M-tile: as large as possible (<= tm_max) but keep >= 2 grid steps
    so both v7x TensorCores get work even on the smallest layers."""
    m8 = _round_up(m_rows, 8)
    if m8 <= 8:
        return m8
    half = _round_up((m8 + 1) // 2, 8)
    return min(tm_max, half)


# -----------------------------------------------------------------------------
# Pallas kernels
# -----------------------------------------------------------------------------
def _conv_mm_kernel(x_ref, w_ref, bias_ref, o_ref, *, relu):
    """(tm, K)bf16 @ (K, tn)bf16 on the MXU with f32 accumulation; fused
    folded-BN bias and optional ReLU. No residual input streamed."""
    acc = jnp.dot(x_ref[...], w_ref[...], preferred_element_type=jnp.float32)
    acc = acc + bias_ref[...]
    if relu:
        acc = jnp.maximum(acc, 0.0)
    o_ref[...] = acc.astype(o_ref.dtype)


def _conv_mm_res_kernel(x_ref, w_ref, bias_ref, res_ref, o_ref, *, relu):
    """Same as _conv_mm_kernel plus fused residual add (ResNet shortcut)."""
    acc = jnp.dot(x_ref[...], w_ref[...], preferred_element_type=jnp.float32)
    acc = acc + bias_ref[...] + res_ref[...].astype(jnp.float32)
    if relu:
        acc = jnp.maximum(acc, 0.0)
    o_ref[...] = acc.astype(o_ref.dtype)


def _maxpool_kernel(p_ref, o_ref):
    """p_ref: (9, tm, C) window taps. Pairwise VPU maximums, lane-dense store."""
    m = jnp.maximum(p_ref[0], p_ref[1])
    for t in range(2, 9):
        m = jnp.maximum(m, p_ref[t])
    o_ref[...] = m


def _gap_mlp_kernel(x_ref, w1_ref, b1_ref, w2_ref, b2_ref, o_ref):
    """Fused global-average-pool + NonLinearMLP (Linear -> ReLU -> Linear)."""
    feat = jnp.mean(x_ref[...].astype(jnp.float32), axis=1)            # (Bp, C)
    h = jnp.dot(feat.astype(w1_ref.dtype), w1_ref[...],
                preferred_element_type=jnp.float32) + b1_ref[...]
    h = jnp.maximum(h, 0.0)
    y = jnp.dot(h.astype(w2_ref.dtype), w2_ref[...],
                preferred_element_type=jnp.float32) + b2_ref[...]
    o_ref[...] = y.astype(o_ref.dtype)


# -----------------------------------------------------------------------------
# Wrappers (plain-JAX glue: im2col, padding, reshapes)
# -----------------------------------------------------------------------------
def _im2col(x_nhwc, kh, kw, stride, pad, m_align):
    """im2col. Pads M (rows) to a multiple of m_align and K (cols) to a multiple
    of 128 lanes in a single materialization."""
    B, H, W, C = x_nhwc.shape
    xp = jnp.pad(x_nhwc, ((0, 0), (pad, pad), (pad, pad), (0, 0))) if pad else x_nhwc
    OH = (H + 2 * pad - kh) // stride + 1
    OW = (W + 2 * pad - kw) // stride + 1
    taps = [xp[:, i:i + stride * OH:stride, j:j + stride * OW:stride, :]
            for i in range(kh) for j in range(kw)]
    cols = jnp.stack(taps, axis=3).reshape(B * OH * OW, kh * kw * C)
    M, K = cols.shape
    Mp, Kp = _round_up(M, m_align), _round_up(K, _LANE)
    if Mp != M or Kp != K:
        cols = jnp.pad(cols, ((0, Mp - M), (0, Kp - K)))
    return cols.astype(_ACT_DTYPE), OH, OW, M


def conv_bn_act(x_nhwc, p, *, kh, kw, stride, pad, residual=None, relu=True):
    """Conv (via im2col) + folded-BN bias (+residual) (+ReLU) as one Pallas matmul.

    Returns (out_padded (Mp, Np) bf16, M, OH, OW). Caller slices [:M] to reshape
    spatially; the padded form can be fed directly as a residual to a later conv
    at the same spatial size.
    """
    B, H, W, _ = x_nhwc.shape
    OH = (H + 2 * pad - kh) // stride + 1
    OW = (W + 2 * pad - kw) // stride + 1
    M = B * OH * OW
    tm = _pick_tm(M)

    cols, OH, OW, M = _im2col(x_nhwc, kh, kw, stride, pad, m_align=tm)
    Mp, Kp = cols.shape
    w = p["w"]                                   # (Kp, Np) bf16, BN scale pre-folded
    Np = w.shape[1]
    assert Kp == w.shape[0], (Kp, w.shape)
    bias2 = p["bias"].reshape(1, Np)             # f32 epilogue bias

    tn = 256 if Np % 256 == 0 else 128
    grid = (Mp // tm, Np // tn)
    common = dict(
        out_shape=jax.ShapeDtypeStruct((Mp, Np), _ACT_DTYPE),
        grid=grid,
        out_specs=pl.BlockSpec((tm, tn), lambda i, j: (i, j)),
        compiler_params=pltpu.CompilerParams(
            dimension_semantics=("parallel", "parallel"),
            vmem_limit_bytes=_VMEM_LIMIT,
        ),
    )

    if residual is None:
        out = pl.pallas_call(
            functools.partial(_conv_mm_kernel, relu=relu),
            in_specs=[
                pl.BlockSpec((tm, Kp), lambda i, j: (i, 0)),
                pl.BlockSpec((Kp, tn), lambda i, j: (0, j)),
                pl.BlockSpec((1, tn), lambda i, j: (0, j)),
            ],
            **common,
        )(cols, w, bias2)
    else:
        assert residual.shape == (Mp, Np), (residual.shape, (Mp, Np))
        out = pl.pallas_call(
            functools.partial(_conv_mm_res_kernel, relu=relu),
            in_specs=[
                pl.BlockSpec((tm, Kp), lambda i, j: (i, 0)),
                pl.BlockSpec((Kp, tn), lambda i, j: (0, j)),
                pl.BlockSpec((1, tn), lambda i, j: (0, j)),
                pl.BlockSpec((tm, tn), lambda i, j: (i, j)),
            ],
            **common,
        )(cols, w, bias2, residual)
    return out, M, OH, OW


def maxpool_3x3_s2_p1(x_nhwc):
    B, H, W, C = x_nhwc.shape
    k, s, pad = 3, 2, 1
    OH = (H + 2 * pad - k) // s + 1
    OW = (W + 2 * pad - k) // s + 1
    xp = jnp.pad(x_nhwc, ((0, 0), (pad, pad), (pad, pad), (0, 0)),
                 constant_values=_NEG_LARGE)
    taps = [xp[:, i:i + s * OH:s, j:j + s * OW:s, :].reshape(B * OH * OW, C)
            for i in range(k) for j in range(k)]
    p = jnp.stack(taps, axis=0)                  # (9, M, C) lane-dense taps
    M = B * OH * OW
    tm = _pick_tm(M)
    Mp = _round_up(M, tm)
    if Mp != M:
        p = jnp.pad(p, ((0, 0), (0, Mp - M), (0, 0)))
    out = pl.pallas_call(
        _maxpool_kernel,
        out_shape=jax.ShapeDtypeStruct((Mp, C), x_nhwc.dtype),
        grid=(Mp // tm,),
        in_specs=[pl.BlockSpec((9, tm, C), lambda i: (0, i, 0))],
        out_specs=pl.BlockSpec((tm, C), lambda i: (i, 0)),
        compiler_params=pltpu.CompilerParams(dimension_semantics=("parallel",)),
    )(p)
    return out[:M].reshape(B, OH, OW, C)


def gap_mlp(x_nhwc, proj):
    """Fused adaptive-avgpool-to-1x1 + flatten + NonLinearMLP projector."""
    B, H, W, C = x_nhwc.shape
    Bp = _round_up(B, 8)                         # pad batch to 8 sublanes
    x3 = x_nhwc.reshape(B, H * W, C)
    if Bp != B:
        x3 = jnp.pad(x3, ((0, Bp - B), (0, 0), (0, 0)))
    out_dim = proj["w2t"].shape[1]
    out = pl.pallas_call(
        _gap_mlp_kernel,
        out_shape=jax.ShapeDtypeStruct((Bp, out_dim), jnp.float32),
    )(x3, proj["w1t"], proj["b1"], proj["w2t"], proj["b2"])
    return out[:B]


# -----------------------------------------------------------------------------
# Parameter construction (deterministic, synthetic)
# -----------------------------------------------------------------------------
def _fold_bn(gamma, beta, mean, var, eps=1e-5):
    scale = gamma / jnp.sqrt(var + eps)
    bias = beta - mean * scale
    return scale, bias


def _conv_params(key, cout, cin, kh, kw, cin_pad, cout_pad):
    """Conv weight in im2col layout with eval-mode BN scale folded in, channel
    dims zero-padded to lane-dense widths, K padded to a multiple of 128."""
    kw_, kbn = jax.random.split(key)
    w = 0.05 * jax.random.normal(kw_, (cout, cin, kh, kw), jnp.float32)  # PyTorch layout
    k1, k2, k3, k4 = jax.random.split(kbn, 4)
    gamma = 1.0 + 0.1 * jax.random.normal(k1, (cout,), jnp.float32)
    beta = 0.1 * jax.random.normal(k2, (cout,), jnp.float32)
    mean = 0.1 * jax.random.normal(k3, (cout,), jnp.float32)
    var = 1.0 + jnp.abs(0.1 * jax.random.normal(k4, (cout,), jnp.float32))
    scale, bias = _fold_bn(gamma, beta, mean, var)

    w = w * scale[:, None, None, None]                       # fold BN scale offline
    w_pad = jnp.zeros((cout_pad, cin_pad, kh, kw), jnp.float32).at[:cout, :cin].set(w)
    w_mat = jnp.transpose(w_pad, (2, 3, 1, 0)).reshape(kh * kw * cin_pad, cout_pad)
    Kp = _round_up(w_mat.shape[0], _LANE)
    if Kp != w_mat.shape[0]:
        w_mat = jnp.pad(w_mat, ((0, Kp - w_mat.shape[0]), (0, 0)))
    bias_pad = jnp.zeros((cout_pad,), jnp.float32).at[:cout].set(bias)
    return {"w": w_mat.astype(_ACT_DTYPE), "bias": bias_pad}


def make_params(key, in_ch=3, stem_ch=16, mid_ch=8, out_ch=32, feat_dim=32, proj_dim=128):
    keys = jax.random.split(key, 6)
    cpad = _LANE
    params = {
        # stem input keeps its raw 3 channels; K (7*7*3=147) is padded to 256 instead.
        "conv1": _conv_params(keys[0], stem_ch, in_ch, 7, 7, cin_pad=in_ch, cout_pad=cpad),
        "conv_a": _conv_params(keys[1], mid_ch, stem_ch, 1, 1, cin_pad=cpad, cout_pad=cpad),
        "conv_b": _conv_params(keys[2], mid_ch, mid_ch, 3, 3, cin_pad=cpad, cout_pad=cpad),
        "conv_c": _conv_params(keys[3], out_ch, mid_ch, 1, 1, cin_pad=cpad, cout_pad=cpad),
        "conv_d": _conv_params(keys[4], out_ch, stem_ch, 1, 1, cin_pad=cpad, cout_pad=cpad),
    }
    hidden = feat_dim                     # NonLinearMLP: hidden_dim defaults to input_dim
    hp = _round_up(hidden, _LANE)
    fp = cpad                             # GAP features live in the 128-lane padded space
    pp = _round_up(proj_dim, _LANE)
    k1, k2, k3, k4 = jax.random.split(keys[5], 4)
    w1 = 0.05 * jax.random.normal(k1, (feat_dim, hidden), jnp.float32)
    b1 = 0.05 * jax.random.normal(k2, (hidden,), jnp.float32)
    w2 = 0.05 * jax.random.normal(k3, (hidden, proj_dim), jnp.float32)
    b2 = 0.05 * jax.random.normal(k4, (proj_dim,), jnp.float32)
    params["proj"] = {
        "w1t": jnp.zeros((fp, hp), jnp.float32).at[:feat_dim, :hidden].set(w1).astype(_ACT_DTYPE),
        "b1": jnp.zeros((1, hp), jnp.float32).at[0, :hidden].set(b1),
        "w2t": jnp.zeros((hp, pp), jnp.float32).at[:hidden, :proj_dim].set(w2).astype(_ACT_DTYPE),
        "b2": jnp.zeros((1, pp), jnp.float32).at[0, :proj_dim].set(b2),
    }
    return params


# -----------------------------------------------------------------------------
# Forward pass (ImageEncoder.forward)
# -----------------------------------------------------------------------------
def image_encoder_forward(x_nchw, params):
    # layout: NCHW (PyTorch) -> NHWC internally (channels on the 128-lane axis).
    x = jnp.transpose(x_nchw, (0, 2, 3, 1)).astype(_ACT_DTYPE)
    B = x.shape[0]

    # ---- stem: 7x7/2 conv + folded-BN + ReLU ----
    y_flat, M, OH, OW = conv_bn_act(x, params["conv1"], kh=7, kw=7, stride=2, pad=3)
    y = y_flat[:M].reshape(B, OH, OW, -1)

    # ---- 3x3/2 maxpool ----
    y = maxpool_3x3_s2_p1(y)
    B, OH, OW, _ = y.shape

    # ---- one bottleneck block (1x1 -> 3x3 -> 1x1, + downsampled identity) ----
    ident = y
    a_flat, M, _, _ = conv_bn_act(y, params["conv_a"], kh=1, kw=1, stride=1, pad=0)
    a = a_flat[:M].reshape(B, OH, OW, -1)

    b_flat, M, _, _ = conv_bn_act(a, params["conv_b"], kh=3, kw=3, stride=1, pad=1)
    b = b_flat[:M].reshape(B, OH, OW, -1)

    # downsample 1x1 conv (no ReLU) — stays in padded (Mp, Np) form for the fused residual
    ds_flat, _, _, _ = conv_bn_act(ident, params["conv_d"], kh=1, kw=1, stride=1, pad=0,
                                   relu=False)

    c_flat, M, _, _ = conv_bn_act(b, params["conv_c"], kh=1, kw=1, stride=1, pad=0,
                                  residual=ds_flat, relu=True)
    c = c_flat[:M].reshape(B, OH, OW, -1)

    # ---- fused global-average-pool + NonLinearMLP projector ----
    out = gap_mlp(c, params["proj"])                                   # (B, 128)
    return out


# -----------------------------------------------------------------------------
if __name__ == "__main__":
    key = jax.random.PRNGKey(0)
    k_x, k_p = jax.random.split(key)
    x = jax.random.normal(k_x, (2, 3, 16, 16), jnp.float32)   # NCHW like PyTorch
    params = make_params(k_p)

    out = image_encoder_forward(x, params)
    out = jax.block_until_ready(out)

    assert out.shape == (2, 128), out.shape
    assert bool(jnp.all(jnp.isfinite(out)))
    print("KERNEL_OK")
</pallas_src>

<mosaic_0001>
module attributes {stable_mosaic.version = 11 : i64} {
  func.func @_conv_mm_kernel(%arg0: i32, %arg1: i32, %arg2: memref<64x256xbf16, #tpu.memory_space<vmem>>, %arg3: memref<256x128xbf16, #tpu.memory_space<vmem>>, %arg4: memref<1x128xf32, #tpu.memory_space<vmem>>, %arg5: memref<64x128xbf16, #tpu.memory_space<vmem>>) attributes {dimension_semantics = [#tpu.dimension_semantics<parallel>, #tpu.dimension_semantics<parallel>], iteration_bounds = array<i64: 2, 1>, scalar_prefetch = 0 : i64, scratch_operands = 0 : i64, tpu.core_type = #tpu.core_type<tc>, window_params = [{transform_indices = @transform_0, window_bounds = array<i64: 64, 256>}, {transform_indices = @transform_1, window_bounds = array<i64: 256, 128>}, {transform_indices = @transform_2, window_bounds = array<i64: 1, 128>}, {transform_indices = @transform_3, window_bounds = array<i64: 64, 128>}]} {
    %c0 = arith.constant 0 : index
    %c0_0 = arith.constant 0 : index
    %0 = vector.load %arg2[%c0, %c0_0] : memref<64x256xbf16, #tpu.memory_space<vmem>>, vector<64x256xbf16>
    %c0_1 = arith.constant 0 : index
    %c0_2 = arith.constant 0 : index
    %1 = vector.load %arg3[%c0_1, %c0_2] : memref<256x128xbf16, #tpu.memory_space<vmem>>, vector<256x128xbf16>
    %cst = arith.constant dense<0.000000e+00> : vector<64x128xf32>
    %2 = tpu.matmul %0, %1, %cst {dimension_numbers = #tpu.dot_dimension_numbers<[1], [0], [0], [1], [0, 0, 1, 1], [], []>} : vector<64x256xbf16>, vector<256x128xbf16>, vector<64x128xf32> -> vector<64x128xf32>
    %c0_3 = arith.constant 0 : index
    %c0_4 = arith.constant 0 : index
    %3 = vector.load %arg4[%c0_3, %c0_4] : memref<1x128xf32, #tpu.memory_space<vmem>>, vector<1x128xf32>
    %4 = vector.broadcast %3 : vector<1x128xf32> to vector<64x128xf32>
    %5 = arith.addf %2, %4 : vector<64x128xf32>
    %cst_5 = arith.constant 0.000000e+00 : f32
    %6 = vector.broadcast %cst_5 : f32 to vector<64x128xf32>
    %7 = arith.maximumf %5, %6 : vector<64x128xf32>
    %8 = arith.truncf %7 : vector<64x128xf32> to vector<64x128xbf16>
    %c0_6 = arith.constant 0 : index
    %c0_7 = arith.constant 0 : index
    %9 = vector.load %arg5[%c0_6, %c0_7] : memref<64x128xbf16, #tpu.memory_space<vmem>>, vector<64x128xbf16>
    tpu.vector_store %arg5[%c0_6, %c0_7], %8 {strides = array<i32>} : memref<64x128xbf16, #tpu.memory_space<vmem>>, vector<64x128xbf16>,
    return
  }
  func.func @transform_0(%arg0: i32, %arg1: i32) -> (i32, i32) {
    %c0_i32 = arith.constant 0 : i32
    %c0_i32_0 = arith.constant 0 : i32
    return %arg0, %c0_i32 : i32, i32
  }
  func.func @transform_1(%arg0: i32, %arg1: i32) -> (i32, i32) {
    %c0_i32 = arith.constant 0 : i32
    %c0_i32_0 = arith.constant 0 : i32
    return %c0_i32, %arg1 : i32, i32
  }
  func.func @transform_2(%arg0: i32, %arg1: i32) -> (i32, i32) {
    %c0_i32 = arith.constant 0 : i32
    %c0_i32_0 = arith.constant 0 : i32
    return %c0_i32, %arg1 : i32, i32
  }
  func.func @transform_3(%arg0: i32, %arg1: i32) -> (i32, i32) {
    %c0_i32 = arith.constant 0 : i32
    return %arg0, %arg1 : i32, i32
  }
}

</mosaic_0001>

<llo_original>
// kernel: tpu_custom_call.1
$region0: #{tpu_custom_call.1}
  #allocation0 [shape = 'u32[]', space=smem, size = 0x4, offset = 0x4, fixed_abs, tag = 'smem constant byte address 0x4 - core index']
  #allocation1 [shape = 'u32[72,128]{1,0:T(1,128)}', space=vmem, size = 0x9000, scoped, tag = 'internal scratch']
  %s0 = inlined_call_operand.hbm [shape: bf16[128,256], index: 0, kind: input, shape index: {}]
  %s1 = inlined_call_operand.hbm [shape: bf16[256,128], index: 1, kind: input, shape index: {}]
  %s2 = inlined_call_operand.vmem [shape: f32[1,128], index: 2, kind: input, shape index: {}]
  %s3 = inlined_call_operand.hbm [shape: bf16[128,128], index: 3, kind: output, shape index: {}]
  %s4 = sld [smem:[#allocation0]]
  $region53: #{tpu_custom_call.1} parent=0
    _
  %s6 = ssub.s32 1, %s4
  %s7 = scalar_select 0, %s6, %s4
  $region1: #{tpu_custom_call.1} parent=0
    #allocation2 [shape = 'u8[65536]{0}', space=vmem, size = 0x10000, scoped, tag = 'input window, operand 0']
    #allocation3 [shape = 's32[2]{0}', space=sflag, size = 0x8, scoped, tag = 'scoped memory for tpu_custom_call.1']
    #allocation4 [shape = 's32[2]{0}', space=sflag, size = 0x8, scoped, tag = 'scoped memory for tpu_custom_call.1']
    #allocation5 [shape = 'u8[65536]{0}', space=vmem, size = 0x10000, scoped, tag = 'input window, operand 1, single buffered']
    #allocation6 [shape = 's32[1]{0}', space=sflag, size = 0x4, scoped, tag = 'scoped memory for tpu_custom_call.1']
    #allocation7 [shape = 'u8[32768]{0}', space=vmem, size = 0x8000, scoped, tag = 'output window, operand 0']
    %8 = vsyncpa [#allocation3], 0
    %s9 = scalar_lea.sflag [#allocation3], 1
    %10 = vsyncpa %s9, 0
    %11 = vsyncpa [#allocation6], 0
    %12 = vsyncpa [#allocation4], 0
    %s13 = scalar_lea.sflag [#allocation4], 1
    %14 = vsyncpa %s13, 0
    loop: start=0, step=1, limit=4
    $region2: #{tpu_custom_call.1} parent=1 // loop_pre_header
      _
    $region3: #{tpu_custom_call.1} parent=1 // loop_header
      %s16 = sphi 0, %s20
      %p17 = scmp.ge.s32.totalorder %s16, 4
      %s23 = sphi 0, %s35
      %s24 = sphi 0, %s31
      %s25 = sphi 0, %s23
      %s26 = sphi 0, %s24
      %s27 = sphi 0, %s25
      %s28 = sphi 0, %s26
      %s38 = sphi 0, %s40
      %s41 = sphi 0, %s38
      %s42 = sphi 0, %s41
      %s58 = sphi 0, %s42
      %s64 = sphi 0, %s66
      %s67 = sphi 0, %s64
      %s68 = sphi 0, %s67
      %s84 = sphi 0, %s68
      %s90 = sphi 0, %s92
      %s93 = sphi 0, %s90
      %s94 = sphi 0, %s93
      %s110 = sphi 0, %s94
      %s118 = sphi 0, %s120
      %s121 = sphi 0, %s118
      %s122 = sphi 0, %s121
      %s138 = sphi 0, %s122
    $region4: #{tpu_custom_call.1} parent=1 // loop_header_branch
      %19 = sbr.rel (%p17) target = $region8
    $region5: #{tpu_custom_call.1} parent=1 // loop_body
      %s21 = ssub.s32 %s16, 1
      %s22 = ssub.s32 %s16, 2
      %s29 = sadd.s32 1, %s24
      %p30 = scmp.ge.s32.totalorder %s29, 1
      %s31 = scalar_select %p30, 0, %s29
      %s32 = sadd.s32 1, %s23
      %s33 = scalar_select %p30, %s32, %s23
      %p34 = scmp.ge.s32.totalorder %s33, 2
      %s35 = scalar_select %p34, 0, %s33
      %s36 = ssub.s32 %s23, %s35
      %p37 = scmp.eq.s32.totalorder %s36, 0
      %s39 = sadd.s32 %s38, 1
      %s40 = scalar_select %p37, %s38, %s39
      %p43 = pneg %p37
      %p44 = scmp.eq.s32.totalorder %s16, 1
      %p45 = por %p43, %p44
      %p46 = scmp.ne.s32.totalorder %s38, %s41
      %p47 = scmp.eq.s32.totalorder %s16, 0
      %p48 = por %p46, %p47
      %p49 = scmp.ne.s32.totalorder %s38, %s41
      %p50 = scmp.eq.s32.totalorder %s21, 1
      %p51 = por %p49, %p50
      %p52 = scmp.ne.s32.totalorder %s41, %s42
      %p53 = scmp.eq.s32.totalorder %s21, 0
      %p54 = por %p52, %p53
      %p55 = scmp.ne.s32.totalorder %s41, %s42
      %p56 = scmp.eq.s32.totalorder %s22, 1
      %p57 = por %p55, %p56
      %p59 = scmp.ne.s32.totalorder %s42, %s58
      %p60 = scmp.eq.s32.totalorder %s22, 0
      %p61 = por %p59, %p60
      %s62 = ssub.s32 %s24, %s31
      %p63 = scmp.eq.s32.totalorder %s62, 0
      %s65 = sadd.s32 %s64, 1
      %s66 = scalar_select %p63, %s64, %s65
      %p69 = pneg %p63
      %p70 = scmp.eq.s32.totalorder %s16, 1
      %p71 = por %p69, %p70
      %p72 = scmp.ne.s32.totalorder %s64, %s67
      %p73 = scmp.eq.s32.totalorder %s16, 0
      %p74 = por %p72, %p73
      %p75 = scmp.ne.s32.totalorder %s64, %s67
      %p76 = scmp.eq.s32.totalorder %s21, 1
      %p77 = por %p75, %p76
      %p78 = scmp.ne.s32.totalorder %s67, %s68
      %p79 = scmp.eq.s32.totalorder %s21, 0
      %p80 = por %p78, %p79
      %p81 = scmp.ne.s32.totalorder %s67, %s68
      %p82 = scmp.eq.s32.totalorder %s22, 1
      %p83 = por %p81, %p82
      %p85 = scmp.ne.s32.totalorder %s68, %s84
      %p86 = scmp.eq.s32.totalorder %s22, 0
      %p87 = por %p85, %p86
      %s88 = ssub.s32 %s24, %s31
      %p89 = scmp.eq.s32.totalorder %s88, 0
      %s91 = sadd.s32 %s90, 1
      %s92 = scalar_select %p89, %s90, %s91
      %p95 = pneg %p89
      %p96 = scmp.eq.s32.totalorder %s16, 1
      %p97 = por %p95, %p96
      %p98 = scmp.ne.s32.totalorder %s90, %s93
      %p99 = scmp.eq.s32.totalorder %s16, 0
      %p100 = por %p98, %p99
      %p101 = scmp.ne.s32.totalorder %s90, %s93
      %p102 = scmp.eq.s32.totalorder %s21, 1
      %p103 = por %p101, %p102
      %p104 = scmp.ne.s32.totalorder %s93, %s94
      %p105 = scmp.eq.s32.totalorder %s21, 0
      %p106 = por %p104, %p105
      %p107 = scmp.ne.s32.totalorder %s93, %s94
      %p108 = scmp.eq.s32.totalorder %s22, 1
      %p109 = por %p107, %p108
      %p111 = scmp.ne.s32.totalorder %s94, %s110
      %p112 = scmp.eq.s32.totalorder %s22, 0
      %p113 = por %p111, %p112
      %s114 = ssub.s32 %s23, %s35
      %s115 = ssub.s32 %s24, %s31
      %s116 = sor.u32 %s114, %s115
      %p117 = scmp.eq.s32.totalorder %s116, 0
      %s119 = sadd.s32 %s118, 1
      %s120 = scalar_select %p117, %s118, %s119
      %p123 = pneg %p117
      %p124 = scmp.eq.s32.totalorder %s16, 1
      %p125 = por %p123, %p124
      %p126 = scmp.ne.s32.totalorder %s118, %s121
      %p127 = scmp.eq.s32.totalorder %s16, 0
      %p128 = por %p126, %p127
      %p129 = scmp.ne.s32.totalorder %s118, %s121
      %p130 = scmp.eq.s32.totalorder %s21, 1
      %p131 = por %p129, %p130
      %p132 = scmp.ne.s32.totalorder %s121, %s122
      %p133 = scmp.eq.s32.totalorder %s21, 0
      %p134 = por %p132, %p133
      %p135 = scmp.ne.s32.totalorder %s121, %s122
      %p136 = scmp.eq.s32.totalorder %s22, 1
      %p137 = por %p135, %p136
      %p139 = scmp.ne.s32.totalorder %s122, %s138
      %p140 = scmp.eq.s32.totalorder %s22, 0
      %p141 = por %p139, %p140
      %p142 = scmp.le.s32.totalorder 1, %s16
      %p143 = scmp.lt.s32.totalorder %s16, 3
      %p144 = pnand %p142, %p143
      %p145 = pneg %p144
      // Predicated region
      $region9: #{tpu_custom_call.1} parent=5 // pred_check
        _
      $region10: #{tpu_custom_call.1} parent=5 // pred_check_branch
        %147 = sbr.rel (%p144) target = $region12
      $region11: #{tpu_custom_call.1} parent=5 // pred_region
        %s148 = ssub.s32 %s16, 1
        // Predicated region
        $region13: #{tpu_custom_call.1} parent=11 // pred_check
          %p149 = pneg %p80
        $region14: #{tpu_custom_call.1} parent=11 // pred_check_branch
          %151 = sbr.rel (%p149) target = $region16
        $region15: #{tpu_custom_call.1} parent=11 // pred_region
          %153 = vsyncadd [#allocation6], 0
          %s154 = smul.addr %s26, 4
          %s155 = scalar_lea.hbm %s1, %s154
          %s156 = sshll.u32 %s155, 4
          %s157 = int_to_ptr.hbm [resolvable:$true] %s156
          %s158 = sshll.u32 [#allocation5], 4
          %s159 = int_to_ptr.vmem [resolvable:$true] %s158
          %164 = dma.hbm_to_vmem [thread:$0]  %s157, 2048, %s159, [#allocation6], 64, 64, 4
        $region16: #{tpu_custom_call.1} parent=11 // pred_fallthru
          _
        // Predicated region
        $region17: #{tpu_custom_call.1} parent=11 // pred_check
          %p165 = pneg %p106
        $region18: #{tpu_custom_call.1} parent=11 // pred_check_branch
          %167 = sbr.rel (%p165) target = $region20
        $region19: #{tpu_custom_call.1} parent=11 // pred_region
          %p168 = scmp.lt.s32.totalorder %s26, 0
          %s169 = scalar_select %p168, %s26, 0
          %s170 = scalar_lea.vmem %s2, %s169
        $region20: #{tpu_custom_call.1} parent=11 // pred_fallthru
          _
      $region12: #{tpu_custom_call.1} parent=5 // pred_fallthru
        _
      %p171 = scmp.lt.s32.totalorder %s16, 2
      // Predicated region
      $region21: #{tpu_custom_call.1} parent=5 // pred_check
        %p172 = pneg %p171
      $region22: #{tpu_custom_call.1} parent=5 // pred_check_branch
        %174 = sbr.rel (%p172) target = $region24
      $region23: #{tpu_custom_call.1} parent=5 // pred_region
        // Predicated region
        $region25: #{tpu_custom_call.1} parent=23 // pred_check
          %p175 = pneg %p48
        $region26: #{tpu_custom_call.1} parent=23 // pred_check_branch
          %177 = sbr.rel (%p175) target = $region28
        $region27: #{tpu_custom_call.1} parent=23 // pred_region
          %s178 = sand.u32 %s38, 1
          %s179 = scalar_lea.sflag [#allocation3], %s178
          %s180 = sand.u32 %s38, 1
          %s181 = smul.addr %s180, 64
          %s182 = scalar_lea.vmem [#allocation2], %s181
          %s183 = smul.u32 8, %s23
          %185 = vsyncadd %s179, 0
          %s186 = smul.addr %s183, 2
          %s187 = smul.addr %s186, 4
          %s188 = scalar_lea.hbm %s0, %s187
          %s189 = sshll.u32 %s188, 4
          %s190 = int_to_ptr.hbm [resolvable:$true] %s189
          %s191 = sshll.u32 %s182, 4
          %s192 = int_to_ptr.vmem [resolvable:$true] %s191
          %197 = dma.hbm_to_vmem [thread:$0]  %s190, 1024, %s192, %s179, 128, 128, 8
        $region28: #{tpu_custom_call.1} parent=23 // pred_fallthru
          _
      $region24: #{tpu_custom_call.1} parent=5 // pred_fallthru
        _
      %p198 = scmp.le.s32.totalorder 1, %s16
      %p199 = scmp.lt.s32.totalorder %s16, 3
      %p200 = pnand %p198, %p199
      %p201 = pneg %p200
      // Predicated region
      $region29: #{tpu_custom_call.1} parent=5 // pred_check
        _
      $region30: #{tpu_custom_call.1} parent=5 // pred_check_branch
        %203 = sbr.rel (%p200) target = $region32
      $region31: #{tpu_custom_call.1} parent=5 // pred_region
        %s204 = ssub.s32 %s16, 1
        %s205 = sand.u32 %s41, 1
        %s206 = scalar_lea.sflag [#allocation3], %s205
        %s207 = sand.u32 %s41, 1
        %s208 = smul.addr %s207, 64
        %s209 = scalar_lea.vmem [#allocation2], %s208
        // Predicated region
        $region33: #{tpu_custom_call.1} parent=31 // pred_check
          %p210 = pneg %p54
        $region34: #{tpu_custom_call.1} parent=31 // pred_check_branch
          %212 = sbr.rel (%p210) target = $region36
        $region35: #{tpu_custom_call.1} parent=31 // pred_region
          %214 = dma.done %s206, 1024
        $region36: #{tpu_custom_call.1} parent=31 // pred_fallthru
          _
        // Predicated region
        $region37: #{tpu_custom_call.1} parent=31 // pred_check
          %p215 = pneg %p80
        $region38: #{tpu_custom_call.1} parent=31 // pred_check_branch
          %217 = sbr.rel (%p215) target = $region40
        $region39: #{tpu_custom_call.1} parent=31 // pred_region
          %219 = dma.done [#allocation6], 2048
        $region40: #{tpu_custom_call.1} parent=31 // pred_fallthru
          _
        %s220 = sand.u32 %s41, 1
        %s221 = scalar_lea.sflag [#allocation3], %s220
        %s222 = sand.u32 %s41, 1
        %s223 = smul.addr %s222, 64
        %s224 = scalar_lea.vmem [#allocation2], %s223
        %p225 = pneg %p54
        %p226 = pneg %p51
        %p227 = pneg %p80
        %p228 = pneg %p77
        %p229 = scmp.lt.s32.totalorder %s26, 0
        %s230 = scalar_select %p229, %s26, 0
        %s231 = scalar_lea.vmem %s2, %s230
        %p232 = pneg %p106
        %p233 = pneg %p103
        %p234 = pneg %p134
        %p235 = pneg %p131
        %s236 = sand.u32 %s121, 1
        %s237 = scalar_lea.sflag [#allocation4], %s236
        %s238 = sand.u32 %s121, 1
        %s239 = smul.addr %s238, 32
        %s240 = scalar_lea.vmem [#allocation7], %s239
        %s241 = smul.u32 8, %s25
        %p242 = scmp.lt.s32.totalorder %s26, 0
        %s243 = scalar_select %p242, %s26, 0
        %s244 = scalar_lea.vmem %s2, %s243
        %s245 = smul.u32 8, %s25
        %v246 = vld [vmem:[%s209] sm:$0xff]
        %v247 = vld [vmem:[%s209 + $0x8] sm:$0xff]
        %v248 = vld [vmem:[%s209 + $0x10] sm:$0xff]
        %v249 = vld [vmem:[%s209 + $0x18] sm:$0xff]
        %v250 = vld [vmem:[%s209 + $0x20] sm:$0xff]
        %v251 = vld [vmem:[%s209 + $0x28] sm:$0xff]
        %v252 = vld [vmem:[%s209 + $0x30] sm:$0xff]
        %v253 = vld [vmem:[%s209 + $0x38] sm:$0xff]
        %v254 = vld [vmem:[#allocation5] sm:$0xf]
        %v255 = vld [vmem:[#allocation5 + $0x4] sm:$0xf]
        %v256 = vld [vmem:[#allocation5 + $0x8] sm:$0xf]
        %v257 = vld [vmem:[#allocation5 + $0xc] sm:$0xf]
        %v258 = vld [vmem:[#allocation5 + $0x10] sm:$0xf]
        %v259 = vld [vmem:[#allocation5 + $0x14] sm:$0xf]
        %v260 = vld [vmem:[#allocation5 + $0x18] sm:$0xf]
        %v261 = vld [vmem:[#allocation5 + $0x1c] sm:$0xf]
        %v262 = vld [vmem:[#allocation5 + $0x20] sm:$0xf]
        %v263 = vld [vmem:[#allocation5 + $0x24] sm:$0xf]
        %v264 = vld [vmem:[#allocation5 + $0x28] sm:$0xf]
        %v265 = vld [vmem:[#allocation5 + $0x2c] sm:$0xf]
        %v266 = vld [vmem:[#allocation5 + $0x30] sm:$0xf]
        %v267 = vld [vmem:[#allocation5 + $0x34] sm:$0xf]
        %v268 = vld [vmem:[#allocation5 + $0x38] sm:$0xf]
        %v269 = vld [vmem:[#allocation5 + $0x3c] sm:$0xf]
        %v270 = vld [vmem:[#allocation5 + $0x40] sm:$0xf]
        %v271 = vld [vmem:[#allocation5 + $0x44] sm:$0xf]
        %v272 = vld [vmem:[#allocation5 + $0x48] sm:$0xf]
        %v273 = vld [vmem:[#allocation5 + $0x4c] sm:$0xf]
        %v274 = vld [vmem:[#allocation5 + $0x50] sm:$0xf]
        %v275 = vld [vmem:[#allocation5 + $0x54] sm:$0xf]
        %v276 = vld [vmem:[#allocation5 + $0x58] sm:$0xf]
        %v277 = vld [vmem:[#allocation5 + $0x5c] sm:$0xf]
        %v278 = vld [vmem:[#allocation5 + $0x60] sm:$0xf]
        %v279 = vld [vmem:[#allocation5 + $0x64] sm:$0xf]
        %v280 = vld [vmem:[#allocation5 + $0x68] sm:$0xf]
        %v281 = vld [vmem:[#allocation5 + $0x6c] sm:$0xf]
        %v282 = vld [vmem:[#allocation5 + $0x70] sm:$0xf]
        %v283 = vld [vmem:[#allocation5 + $0x74] sm:$0xf]
        %v284 = vld [vmem:[#allocation5 + $0x78] sm:$0xf]
        %v285 = vld [vmem:[#allocation5 + $0x7c] sm:$0xf]
        %v286 = vld [vmem:[%s244] sm:$0x1]
        %v288 = vperm.slane %v286, 0
        %v298 = vunpack.c.l.b16 %v246
        %v299 = vunpack.c.h.b16 %v246
        %v300 = vunpack.c.l.b16 %v247
        %v301 = vunpack.c.h.b16 %v247
        %v302 = vunpack.c.l.b16 %v248
        %v303 = vunpack.c.h.b16 %v248
        %v304 = vunpack.c.l.b16 %v249
        %v305 = vunpack.c.h.b16 %v249
        %v306 = vunpack.c.l.b16 %v250
        %v307 = vunpack.c.h.b16 %v250
        %v308 = vunpack.c.l.b16 %v251
        %v309 = vunpack.c.h.b16 %v251
        %v310 = vunpack.c.l.b16 %v252
        %v311 = vunpack.c.h.b16 %v252
        %v312 = vunpack.c.l.b16 %v253
        %v313 = vunpack.c.h.b16 %v253
        %v314 = vpack.c.b16 %v300, %v298
        %v315 = vpack.c.b16 %v301, %v299
        %v316 = vpack.c.b16 %v304, %v302
        %v317 = vpack.c.b16 %v305, %v303
        %v318 = vpack.c.b16 %v308, %v306
        %v319 = vpack.c.b16 %v309, %v307
        %v320 = vpack.c.b16 %v312, %v310
        %v321 = vpack.c.b16 %v313, %v311
        %v362 = vunpack.c.l.b16 %v254
        %v363 = vunpack.c.l.b16 %v255
        %v364 = vunpack.c.l.b16 %v256
        %v365 = vunpack.c.l.b16 %v257
        %v366 = vunpack.c.l.b16 %v258
        %v367 = vunpack.c.l.b16 %v259
        %v368 = vunpack.c.l.b16 %v260
        %v369 = vunpack.c.l.b16 %v261
        %v370 = vunpack.c.l.b16 %v262
        %v371 = vunpack.c.l.b16 %v263
        %v372 = vunpack.c.l.b16 %v264
        %v373 = vunpack.c.l.b16 %v265
        %v374 = vunpack.c.l.b16 %v266
        %v375 = vunpack.c.l.b16 %v267
        %v376 = vunpack.c.l.b16 %v268
        %v377 = vunpack.c.l.b16 %v269
        %v378 = vunpack.c.l.b16 %v270
        %v379 = vunpack.c.l.b16 %v271
        %v380 = vunpack.c.l.b16 %v272
        %v381 = vunpack.c.l.b16 %v273
        %v382 = vunpack.c.l.b16 %v274
        %v383 = vunpack.c.l.b16 %v275
        %v384 = vunpack.c.l.b16 %v276
        %v385 = vunpack.c.l.b16 %v277
        %v386 = vunpack.c.l.b16 %v278
        %v387 = vunpack.c.l.b16 %v279
        %v388 = vunpack.c.l.b16 %v280
        %v389 = vunpack.c.l.b16 %v281
        %v390 = vunpack.c.l.b16 %v282
        %v391 = vunpack.c.l.b16 %v283
        %v392 = vunpack.c.l.b16 %v284
        %v393 = vunpack.c.l.b16 %v285
        %v394 = vpack.c.b16 %v363, %v362
        %v395 = vpack.c.b16 %v365, %v364
        %v396 = vpack.c.b16 %v367, %v366
        %v397 = vpack.c.b16 %v369, %v368
        %v398 = vpack.c.b16 %v371, %v370
        %v399 = vpack.c.b16 %v373, %v372
        %v400 = vpack.c.b16 %v375, %v374
        %v401 = vpack.c.b16 %v377, %v376
        %v402 = vpack.c.b16 %v379, %v378
        %v403 = vpack.c.b16 %v381, %v380
        %v404 = vpack.c.b16 %v383, %v382
        %v405 = vpack.c.b16 %v385, %v384
        %v406 = vpack.c.b16 %v387, %v386
        %v407 = vpack.c.b16 %v389, %v388
        %v408 = vpack.c.b16 %v391, %v390
        %v409 = vpack.c.b16 %v393, %v392
        %426 = vmatpush.bf16.msra.mxu0 %v401
        %427 = vmatpush.bf16.msra.mxu0 %v400
        %428 = vmatpush.bf16.msra.mxu0 %v399
        %429 = vmatpush.bf16.msra.mxu0 %v398
        %430 = vmatpush.bf16.msra.mxu0 %v397
        %431 = vmatpush.bf16.msra.mxu0 %v396
        %432 = vmatpush.bf16.msra.mxu0 %v395
        %433 = vmatpush.bf16.msra.mxu0 %v394
        %434 = vmatmul.bf16.gmra.mxu0 %v314
        %v435 = vpop.f32.mrf.mxu0
        %v436 = vadd.f32 %v288, %v435
        %v437 = vpop.f32.mrf.mxu0
        %v438 = vadd.f32 %v288, %v437
        %439 = vmatmul.bf16.gmra.mxu0 %v316
        %v440 = vpop.f32.mrf.mxu0
        %v441 = vadd.f32 %v288, %v440
        %v442 = vpop.f32.mrf.mxu0
        %v443 = vadd.f32 %v288, %v442
        %444 = vmatmul.bf16.gmra.mxu0 %v318
        %v445 = vpop.f32.mrf.mxu0
        %v446 = vadd.f32 %v288, %v445
        %v447 = vpop.f32.mrf.mxu0
        %v448 = vadd.f32 %v288, %v447
        %449 = vmatmul.bf16.gmra.mxu0 %v320
        %v450 = vpop.f32.mrf.mxu0
        %v451 = vadd.f32 %v288, %v450
        %v452 = vpop.f32.mrf.mxu0
        %v453 = vadd.f32 %v288, %v452
        %454 = vdwg.mxu0
        %455 = vmatpush.bf16.msra.mxu0 %v409
        %456 = vmatpush.bf16.msra.mxu0 %v408
        %457 = vmatpush.bf16.msra.mxu0 %v407
        %458 = vmatpush.bf16.msra.mxu0 %v406
        %459 = vmatpush.bf16.msra.mxu0 %v405
        %460 = vmatpush.bf16.msra.mxu0 %v404
        %461 = vmatpush.bf16.msra.mxu0 %v403
        %462 = vmatpush.bf16.msra.mxu0 %v402
        %463 = vmatmul.bf16.gmra.mxu0 %v315
        %v464 = vpop.f32.mrf.mxu0
        %v465 = vadd.f32 %v436, %v464
        %v466 = vpop.f32.mrf.mxu0
        %v467 = vadd.f32 %v438, %v466
        %468 = vmatmul.bf16.gmra.mxu0 %v317
        %v469 = vpop.f32.mrf.mxu0
        %v470 = vadd.f32 %v441, %v469
        %v471 = vpop.f32.mrf.mxu0
        %v472 = vadd.f32 %v443, %v471
        %473 = vmatmul.bf16.gmra.mxu0 %v319
        %v474 = vpop.f32.mrf.mxu0
        %v475 = vadd.f32 %v446, %v474
        %v476 = vpop.f32.mrf.mxu0
        %v477 = vadd.f32 %v448, %v476
        %478 = vmatmul.bf16.gmra.mxu0 %v321
        %v479 = vpop.f32.mrf.mxu0
        %v480 = vadd.f32 %v451, %v479
        %v481 = vpop.f32.mrf.mxu0
        %v482 = vadd.f32 %v453, %v481
        %483 = vdwg.mxu0
        %v484 = vmax.f32 %v465, 0.0
        %v485 = vmax.f32 %v467, 0.0
        %v486 = vmax.f32 %v470, 0.0
        %v487 = vmax.f32 %v472, 0.0
        %v488 = vmax.f32 %v475, 0.0
        %v489 = vmax.f32 %v477, 0.0
        %v490 = vmax.f32 %v480, 0.0
        %v491 = vmax.f32 %v482, 0.0
        %v492 = vpack.c.bf16 %v484, %v484
        %v493 = vpack.c.bf16 %v485, %v485
        %v494 = vpack.c.bf16 %v486, %v486
        %v495 = vpack.c.bf16 %v487, %v487
        %v496 = vpack.c.bf16 %v488, %v488
        %v497 = vpack.c.bf16 %v489, %v489
        %v498 = vpack.c.bf16 %v490, %v490
        %v499 = vpack.c.bf16 %v491, %v491
        %500 = vst [vmem:[%s240] sm:$0xf] %v492
        %501 = vst [vmem:[%s240 + $0x4] sm:$0xf] %v493
        %502 = vst [vmem:[%s240 + $0x8] sm:$0xf] %v494
        %503 = vst [vmem:[%s240 + $0xc] sm:$0xf] %v495
        %504 = vst [vmem:[%s240 + $0x10] sm:$0xf] %v496
        %505 = vst [vmem:[%s240 + $0x14] sm:$0xf] %v497
        %506 = vst [vmem:[%s240 + $0x18] sm:$0xf] %v498
        %507 = vst [vmem:[%s240 + $0x1c] sm:$0xf] %v499
        %s508 = sand.u32 %s121, 1
        %s509 = scalar_lea.sflag [#allocation4], %s508
        %s510 = sand.u32 %s121, 1
        %s511 = smul.addr %s510, 32
        %s512 = scalar_lea.vmem [#allocation7], %s511
        // Predicated region
        $region41: #{tpu_custom_call.1} parent=31 // pred_check
          %p513 = pneg %p131
        $region42: #{tpu_custom_call.1} parent=31 // pred_check_branch
          %515 = sbr.rel (%p513) target = $region44
        $region43: #{tpu_custom_call.1} parent=31 // pred_region
          %s516 = smul.u32 8, %s25
          %518 = vsyncadd %s509, 0
          %s519 = sadd.s32 %s26, %s516
          %s520 = smul.addr %s519, 4
          %s521 = scalar_lea.hbm %s3, %s520
          %s522 = sshll.u32 %s512, 4
          %s523 = int_to_ptr.vmem [resolvable:$true] %s522
          %s524 = sshll.u32 %s521, 4
          %s525 = int_to_ptr.hbm [resolvable:$true] %s524
          %530 = dma.vmem_to_hbm [thread:$0]  %s523, 512, %s525, %s509, 64, 64, 4
        $region44: #{tpu_custom_call.1} parent=31 // pred_fallthru
          _
      $region32: #{tpu_custom_call.1} parent=5 // pred_fallthru
        _
      %p531 = scmp.le.s32.totalorder 2, %s16
      // Predicated region
      $region45: #{tpu_custom_call.1} parent=5 // pred_check
        %p532 = pneg %p531
      $region46: #{tpu_custom_call.1} parent=5 // pred_check_branch
        %534 = sbr.rel (%p532) target = $region48
      $region47: #{tpu_custom_call.1} parent=5 // pred_region
        %s535 = ssub.s32 %s16, 2
        // Predicated region
        $region49: #{tpu_custom_call.1} parent=47 // pred_check
          %p536 = pneg %p137
        $region50: #{tpu_custom_call.1} parent=47 // pred_check_branch
          %538 = sbr.rel (%p536) target = $region52
        $region51: #{tpu_custom_call.1} parent=47 // pred_region
          %s539 = sand.u32 %s122, 1
          %s540 = scalar_lea.sflag [#allocation4], %s539
          %s541 = sand.u32 %s122, 1
          %s542 = smul.addr %s541, 32
          %s543 = scalar_lea.vmem [#allocation7], %s542
          %545 = dma.done %s540, 512
        $region52: #{tpu_custom_call.1} parent=47 // pred_fallthru
          _
      $region48: #{tpu_custom_call.1} parent=5 // pred_fallthru
        _
    $region6: #{tpu_custom_call.1} parent=1 // loop_footer
      %s20 = sadd.s32 1, %s16
    $region7: #{tpu_custom_call.1} parent=1 // loop_footer_branch
      %15 = sbr.rel target = $region3
    $region8: #{tpu_custom_call.1} parent=1 // loop_exit
      _
    %546 = vsyncpa [#allocation3], 1
    %s547 = scalar_lea.sflag [#allocation3], 1
    %548 = vsyncpa %s547, 1
    %549 = vsyncpa [#allocation6], 1
    %550 = vsyncpa [#allocation4], 1
    %s551 = scalar_lea.sflag [#allocation4], 1
    %552 = vsyncpa %s551, 1

</llo_original>
